<compile_context>
chip_gen: v7x
topology: tpu7x:2x2x1
jax: 0.10.0
libtpu: 0.0.40
codegen_flags: <defaults>
</compile_context>

<pallas_src>
import functools

import numpy as np

import jax
import jax.numpy as jnp
from jax.experimental import pallas as pl
from jax.experimental.pallas import tpu as pltpu


def _round_up(v, m):
    return (v + m - 1) // m * m


def _alpha_list(alpha, num_classes):
    """Mirror FocalLoss.__init__: None, float -> [a, 1-a], or per-class list.

    alpha is treated as static module configuration (as in the PyTorch
    module), so it is baked into the kernel as trace-time constants.
    """
    if alpha is None:
        return None
    if isinstance(alpha, (float, int)) and not isinstance(alpha, bool):
        vals = [float(alpha), 1.0 - float(alpha)]
    else:
        vals = [float(v) for v in np.asarray(alpha).reshape(-1)]
    assert len(vals) == num_classes, "alpha must have one entry per class"
    return tuple(vals)


def _focal_weight(one_minus_pt, gamma):
    """(1 - pt) ** gamma with integer gamma lowered as repeated multiplies."""
    g = float(gamma)
    if g == 0.0:
        return None
    if g > 0.0 and g == int(g) and int(g) <= 8:
        w = one_minus_pt
        for _ in range(int(g) - 1):
            w = w * one_minus_pt
        return w
    # Non-integer gamma: keep jnp pow (pow(0, g) handling matches torch).
    return one_minus_pt ** g


# --------------------------------------------------------------------------
# 4-D (NCHW) path: classes on the leading axis, (S, 128) dense spatial plane.
# --------------------------------------------------------------------------
def _focal_loss_kernel_nchw(x_ref, t_ref, out_ref, *, gamma, alpha, hw_total,
                            need_mask):
    """One (batch n, spatial tile j) grid cell.

    x_ref  : (1, C, S, 128) logits tile (native dtype, promoted in-kernel)
    t_ref  : (1, 1, S, 128) int32 targets
    out_ref: (1, 1, 1, 128) per-lane partial sums
    """
    j = pl.program_id(1)

    x = x_ref[0].astype(jnp.float32)          # (C, S, 128)
    t = t_ref[0, 0]                           # (S, 128) int32
    C, S, _ = x.shape

    # log-softmax over the class axis: reductions across vreg planes only
    # (pure VALU), never across lanes/sublanes.
    mx = jnp.max(x, axis=0)                   # (S, 128)
    z = x - mx                                # (C, S, 128)
    expz = jnp.exp(z)                         # (C, S, 128)  EUP
    sumexp = jnp.sum(expz, axis=0)            # (S, 128)

    # Gather the target class / alpha with an unrolled per-class select
    # (C is small and static) -- no cross-lane gather, no non-minor iota.
    z_t = z[0]
    e_t = expz[0]
    at = None
    if alpha is not None:
        at = jnp.full((S, 128), alpha[0], dtype=jnp.float32)
    for c in range(1, C):
        m = t == c
        z_t = jnp.where(m, z[c], z_t)
        e_t = jnp.where(m, expz[c], e_t)
        if alpha is not None:
            at = jnp.where(m, jnp.float32(alpha[c]), at)

    logpt = z_t - jnp.log(sumexp)             # (S, 128)
    # pt = softmax(x)[target]; reuse exp(z) instead of a second exp pass.
    pt = e_t * pl.reciprocal(sumexp, approx=False)

    if alpha is not None:
        logpt = logpt * at

    w = _focal_weight(1.0 - pt, gamma)
    loss = -logpt if w is None else -(w * logpt)   # (S, 128)

    if need_mask:
        # Mask pad / out-of-bounds positions BEFORE any spatial reduction so
        # garbage (possibly NaN) tail data can never propagate into a sum.
        row = jax.lax.broadcasted_iota(jnp.int32, (S, 128), 0)
        lane = jax.lax.broadcasted_iota(jnp.int32, (S, 128), 1)
        pos = (j * S + row) * 128 + lane
        loss = jnp.where(pos < hw_total, loss, 0.0)

    # Per-lane partial sum; the final cross-lane/tile reduction runs in XLA.
    out_ref[...] = jnp.sum(loss, axis=0, keepdims=True)[None, None]


def _focal_loss_nchw(x, target, gamma, alpha, size_average, dma_budget_bytes):
    N, C = int(x.shape[0]), int(x.shape[1])
    HW = 1
    for d in x.shape[2:]:
        HW *= int(d)

    x3 = x.reshape(N, C, HW)                          # free contiguous reshape
    t3 = jnp.reshape(target, (N, 1, HW)).astype(jnp.int32)

    # Pad the flattened spatial axis once to a multiple of 8*128 (only when
    # ragged) so the kernel always sees (sublane, lane)-dense tiles.
    HW_pad = _round_up(HW, 8 * 128)
    if HW_pad != HW:
        x3 = jnp.pad(x3, ((0, 0), (0, 0), (0, HW_pad - HW)))
        t3 = jnp.pad(t3, ((0, 0), (0, 0), (0, HW_pad - HW)))
    S_total = HW_pad // 128
    x4 = x3.reshape(N, C, S_total, 128)               # free
    t4 = t3.reshape(N, 1, S_total, 128)

    # Budget-driven spatial tile (double-buffered logits + targets), multiple
    # of 8 sublanes.
    itemsize = x.dtype.itemsize
    bytes_per_s = 2 * 128 * (C * itemsize + 4)
    s_budget = max(8, (dma_budget_bytes // bytes_per_s) // 8 * 8)
    s_tile = min(S_total, s_budget)
    # v7x megacore: keep at least 2 parallel grid cells whenever possible.
    while N * pl.cdiv(S_total, s_tile) < 2 and s_tile > 8:
        s_tile = max(8, (s_tile // 2) // 8 * 8)
    T = pl.cdiv(S_total, s_tile)

    need_mask = (HW_pad != HW) or (S_total % s_tile != 0)
    alpha_t = _alpha_list(alpha, C)

    kernel = functools.partial(_focal_loss_kernel_nchw, gamma=float(gamma),
                               alpha=alpha_t, hw_total=HW, need_mask=need_mask)

    partials = pl.pallas_call(
        kernel,
        out_shape=jax.ShapeDtypeStruct((N, T, 1, 128), jnp.float32),
        grid_spec=pltpu.PrefetchScalarGridSpec(
            num_scalar_prefetch=0,
            grid=(N, T),
            in_specs=[
                pl.BlockSpec((1, C, s_tile, 128), lambda n, j: (n, 0, j, 0)),
                pl.BlockSpec((1, 1, s_tile, 128), lambda n, j: (n, 0, j, 0)),
            ],
            out_specs=pl.BlockSpec((1, 1, 1, 128), lambda n, j: (n, j, 0, 0)),
        ),
        compiler_params=pltpu.CompilerParams(
            dimension_semantics=("parallel", "parallel"),
            vmem_limit_bytes=32 * 1024 * 1024),
    )(x4, t4)

    m_total = N * HW
    scale = (1.0 / m_total) if size_average else 1.0
    return jnp.sum(partials) * jnp.float32(scale)


# --------------------------------------------------------------------------
# 2-D (M, C) path: native layout, classes on lanes -- no HBM transpose.
# --------------------------------------------------------------------------
def _focal_loss_kernel_2d(x_ref, t_ref, out_ref, *, gamma, alpha, m_total,
                          need_mask):
    """One row tile of the native (M, C) layout.

    x_ref  : (tile_m, C) logits
    t_ref  : (tile_m, 1) int32 targets
    out_ref: (tile_m, 1) per-row loss (masked rows are zero)
    """
    i = pl.program_id(0)

    x = x_ref[...].astype(jnp.float32)                # (tile_m, C)
    t = t_ref[...]                                    # (tile_m, 1)
    TM, C = x.shape

    mx = jnp.max(x, axis=1, keepdims=True)            # (tile_m, 1)
    z = x - mx
    expz = jnp.exp(z)
    sumexp = jnp.sum(expz, axis=1, keepdims=True)

    cls = jax.lax.broadcasted_iota(jnp.int32, (TM, C), 1)
    onehot = (cls == t).astype(jnp.float32)           # (tile_m, C)

    z_t = jnp.sum(z * onehot, axis=1, keepdims=True)
    e_t = jnp.sum(expz * onehot, axis=1, keepdims=True)

    logpt = z_t - jnp.log(sumexp)                     # (tile_m, 1)
    pt = e_t * pl.reciprocal(sumexp, approx=False)

    if alpha is not None:
        a_row = jnp.asarray(alpha, jnp.float32).reshape(1, C)   # constant
        at = jnp.sum(onehot * a_row, axis=1, keepdims=True)
        logpt = logpt * at

    w = _focal_weight(1.0 - pt, gamma)
    loss = -logpt if w is None else -(w * logpt)      # (tile_m, 1)

    if need_mask:
        row = i * TM + jax.lax.broadcasted_iota(jnp.int32, (TM, 1), 0)
        loss = jnp.where(row < m_total, loss, 0.0)

    out_ref[...] = loss


def _focal_loss_2d(x, target, gamma, alpha, size_average, dma_budget_bytes):
    M, C = int(x.shape[0]), int(x.shape[1])
    t2 = jnp.reshape(target, (M, 1)).astype(jnp.int32)

    # Keep the native (M, C) layout so no HBM transpose is emitted.
    M_pad = _round_up(M, 8)
    x2 = x
    if M_pad != M:
        x2 = jnp.pad(x2, ((0, M_pad - M), (0, 0)))
        t2 = jnp.pad(t2, ((0, M_pad - M), (0, 0)))

    itemsize = x.dtype.itemsize
    bytes_per_row = 2 * (C * itemsize + 4)
    tile_m = max(8, min(M_pad, (dma_budget_bytes // bytes_per_row) // 8 * 8))
    while pl.cdiv(M_pad, tile_m) < 2 and tile_m > 8:   # v7x megacore
        tile_m = max(8, (tile_m // 2) // 8 * 8)
    T = pl.cdiv(M_pad, tile_m)

    need_mask = (M_pad != M) or (M_pad % tile_m != 0)
    alpha_t = _alpha_list(alpha, C)

    kernel = functools.partial(_focal_loss_kernel_2d, gamma=float(gamma),
                               alpha=alpha_t, m_total=M, need_mask=need_mask)

    per_row = pl.pallas_call(
        kernel,
        out_shape=jax.ShapeDtypeStruct((T * tile_m, 1), jnp.float32),
        grid_spec=pltpu.PrefetchScalarGridSpec(
            num_scalar_prefetch=0,
            grid=(T,),
            in_specs=[
                pl.BlockSpec((tile_m, C), lambda i: (i, 0)),
                pl.BlockSpec((tile_m, 1), lambda i: (i, 0)),
            ],
            out_specs=pl.BlockSpec((tile_m, 1), lambda i: (i, 0)),
        ),
        compiler_params=pltpu.CompilerParams(
            dimension_semantics=("parallel",),
            vmem_limit_bytes=32 * 1024 * 1024),
    )(x2, t2)

    scale = (1.0 / M) if size_average else 1.0
    return jnp.sum(per_row) * jnp.float32(scale)


def focal_loss(x, target, gamma=0.0, alpha=None, size_average=True,
               dma_budget_bytes=2 * 1024 * 1024):
    """JAX/Pallas equivalent of FocalLoss(gamma, alpha, size_average)(x, target)."""
    x = jnp.asarray(x)
    if x.ndim > 2:
        return _focal_loss_nchw(x, target, gamma, alpha, size_average,
                                dma_budget_bytes)
    return _focal_loss_2d(x, target, gamma, alpha, size_average,
                          dma_budget_bytes)


# --------------------------------------------------------------------------
# Plain-JAX reference mirroring the PyTorch forward, for self-test.
# --------------------------------------------------------------------------
def _reference_focal_loss(x, target, gamma, alpha, size_average):
    x = jnp.asarray(x)
    c = int(x.shape[1])
    if x.ndim > 2:
        n = x.shape[0]
        x2 = jnp.transpose(x.reshape(n, c, -1), (0, 2, 1)).reshape(-1, c)
    else:
        x2 = x
    t = jnp.reshape(jnp.asarray(target), (-1,))
    logp = jax.nn.log_softmax(x2.astype(jnp.float32), axis=1)
    logpt = jnp.take_along_axis(logp, t[:, None], axis=1)[:, 0]
    pt = jnp.exp(logpt)
    avals = _alpha_list(alpha, c)
    if avals is not None:
        logpt = logpt * jnp.asarray(avals, jnp.float32)[t]
    loss = -1.0 * (1.0 - pt) ** gamma * logpt
    return loss.mean() if size_average else loss.sum()


if __name__ == "__main__":
    key = jax.random.PRNGKey(0)
    k1, k2, k3, k4 = jax.random.split(key, 4)

    # 4-D segmentation-style path: NCHW logits, integer class-map targets.
    N, C, H, W = 2, 4, 16, 16
    x = jax.random.normal(k1, (N, C, H, W), dtype=jnp.float32)
    target = jax.random.randint(k2, (N, H, W), 0, C, dtype=jnp.int32)
    gamma = 2.0
    alpha = [0.1, 0.2, 0.3, 0.4]   # per-class weights (len == C)

    loss = jax.block_until_ready(
        focal_loss(x, target, gamma=gamma, alpha=alpha, size_average=True))
    ref = _reference_focal_loss(x, target, gamma, alpha, True)
    assert jnp.allclose(loss, ref, rtol=1e-5, atol=1e-5), (loss, ref)

    # 2-D (M, C) path: native layout (no HBM transpose), alpha=None.
    M2 = 300
    x2 = jax.random.normal(k3, (M2, C), dtype=jnp.float32)
    t2 = jax.random.randint(k4, (M2,), 0, C, dtype=jnp.int32)
    loss2 = jax.block_until_ready(
        focal_loss(x2, t2, gamma=2.0, alpha=None, size_average=True))
    ref2 = _reference_focal_loss(x2, t2, 2.0, None, True)
    assert jnp.allclose(loss2, ref2, rtol=1e-5, atol=1e-5), (loss2, ref2)

    print("KERNEL_OK")
</pallas_src>

<mosaic_0001>
module attributes {stable_mosaic.version = 11 : i64} {
  func.func @_focal_loss_kernel_nchw(%arg0: i32, %arg1: i32, %arg2: memref<1x4x8x128xf32, #tpu.memory_space<vmem>>, %arg3: memref<1x1x8x128xi32, #tpu.memory_space<vmem>>, %arg4: memref<1x1x1x128xf32, #tpu.memory_space<vmem>>) attributes {dimension_semantics = [#tpu.dimension_semantics<parallel>, #tpu.dimension_semantics<parallel>], iteration_bounds = array<i64: 2, 1>, scalar_prefetch = 0 : i64, scratch_operands = 0 : i64, tpu.core_type = #tpu.core_type<tc>, window_params = [{transform_indices = @transform_0, window_bounds = array<i64: 1, 4, 8, 128>}, {transform_indices = @transform_1, window_bounds = array<i64: 1, 1, 8, 128>}, {transform_indices = @transform_2, window_bounds = array<i64: 1, 1, 1, 128>}]} {
    %c0 = arith.constant 0 : index
    %c0_0 = arith.constant 0 : index
    %c0_1 = arith.constant 0 : index
    %c0_2 = arith.constant 0 : index
    %0 = vector.load %arg2[%c0, %c0_0, %c0_1, %c0_2] : memref<1x4x8x128xf32, #tpu.memory_space<vmem>>, vector<1x4x8x128xf32>
    %1 = vector.shape_cast %0 : vector<1x4x8x128xf32> to vector<4x8x128xf32>
    %c0_3 = arith.constant 0 : index
    %c0_4 = arith.constant 0 : index
    %c0_5 = arith.constant 0 : index
    %c0_6 = arith.constant 0 : index
    %2 = vector.load %arg3[%c0_3, %c0_4, %c0_5, %c0_6] : memref<1x1x8x128xi32, #tpu.memory_space<vmem>>, vector<1x1x8x128xi32>
    %3 = vector.shape_cast %2 : vector<1x1x8x128xi32> to vector<8x128xi32>
    %cst = arith.constant dense<0xFF800000> : vector<8x128xf32>
    %4 = vector.multi_reduction <maximumf>, %1, %cst [0] : vector<4x8x128xf32> to vector<8x128xf32>
    %5 = vector.shape_cast %4 : vector<8x128xf32> to vector<1x8x128xf32>
    %6 = vector.broadcast %5 : vector<1x8x128xf32> to vector<4x8x128xf32>
    %7 = arith.subf %1, %6 : vector<4x8x128xf32>
    %8 = math.exp %7 : vector<4x8x128xf32>
    %cst_7 = arith.constant dense<0.000000e+00> : vector<8x128xf32>
    %9 = vector.multi_reduction <add>, %8, %cst_7 [0] : vector<4x8x128xf32> to vector<8x128xf32>
    %10 = vector.extract_strided_slice %7 {offsets = [0, 0, 0], sizes = [1, 8, 128], strides = [1, 1, 1]} : vector<4x8x128xf32> to vector<1x8x128xf32>
    %11 = vector.shape_cast %10 : vector<1x8x128xf32> to vector<8x128xf32>
    %12 = vector.extract_strided_slice %8 {offsets = [0, 0, 0], sizes = [1, 8, 128], strides = [1, 1, 1]} : vector<4x8x128xf32> to vector<1x8x128xf32>
    %13 = vector.shape_cast %12 : vector<1x8x128xf32> to vector<8x128xf32>
    %cst_8 = arith.constant 1.000000e-01 : f32
    %14 = vector.broadcast %cst_8 : f32 to vector<8x128xf32>
    %c1_i32 = arith.constant 1 : i32
    %15 = vector.broadcast %c1_i32 : i32 to vector<8x128xi32>
    %16 = arith.cmpi eq, %3, %15 : vector<8x128xi32>
    %17 = vector.extract_strided_slice %7 {offsets = [1, 0, 0], sizes = [1, 8, 128], strides = [1, 1, 1]} : vector<4x8x128xf32> to vector<1x8x128xf32>
    %18 = vector.shape_cast %17 : vector<1x8x128xf32> to vector<8x128xf32>
    %19 = arith.select %16, %18, %11 : vector<8x128xi1>, vector<8x128xf32>
    %20 = vector.extract_strided_slice %8 {offsets = [1, 0, 0], sizes = [1, 8, 128], strides = [1, 1, 1]} : vector<4x8x128xf32> to vector<1x8x128xf32>
    %21 = vector.shape_cast %20 : vector<1x8x128xf32> to vector<8x128xf32>
    %22 = arith.select %16, %21, %13 : vector<8x128xi1>, vector<8x128xf32>
    %cst_9 = arith.constant 2.000000e-01 : f32
    %23 = vector.broadcast %cst_9 : f32 to vector<8x128xf32>
    %24 = arith.select %16, %23, %14 : vector<8x128xi1>, vector<8x128xf32>
    %c2_i32 = arith.constant 2 : i32
    %25 = vector.broadcast %c2_i32 : i32 to vector<8x128xi32>
    %26 = arith.cmpi eq, %3, %25 : vector<8x128xi32>
    %27 = vector.extract_strided_slice %7 {offsets = [2, 0, 0], sizes = [1, 8, 128], strides = [1, 1, 1]} : vector<4x8x128xf32> to vector<1x8x128xf32>
    %28 = vector.shape_cast %27 : vector<1x8x128xf32> to vector<8x128xf32>
    %29 = arith.select %26, %28, %19 : vector<8x128xi1>, vector<8x128xf32>
    %30 = vector.extract_strided_slice %8 {offsets = [2, 0, 0], sizes = [1, 8, 128], strides = [1, 1, 1]} : vector<4x8x128xf32> to vector<1x8x128xf32>
    %31 = vector.shape_cast %30 : vector<1x8x128xf32> to vector<8x128xf32>
    %32 = arith.select %26, %31, %22 : vector<8x128xi1>, vector<8x128xf32>
    %cst_10 = arith.constant 3.000000e-01 : f32
    %33 = vector.broadcast %cst_10 : f32 to vector<8x128xf32>
    %34 = arith.select %26, %33, %24 : vector<8x128xi1>, vector<8x128xf32>
    %c3_i32 = arith.constant 3 : i32
    %35 = vector.broadcast %c3_i32 : i32 to vector<8x128xi32>
    %36 = arith.cmpi eq, %3, %35 : vector<8x128xi32>
    %37 = vector.extract_strided_slice %7 {offsets = [3, 0, 0], sizes = [1, 8, 128], strides = [1, 1, 1]} : vector<4x8x128xf32> to vector<1x8x128xf32>
    %38 = vector.shape_cast %37 : vector<1x8x128xf32> to vector<8x128xf32>
    %39 = arith.select %36, %38, %29 : vector<8x128xi1>, vector<8x128xf32>
    %40 = vector.extract_strided_slice %8 {offsets = [3, 0, 0], sizes = [1, 8, 128], strides = [1, 1, 1]} : vector<4x8x128xf32> to vector<1x8x128xf32>
    %41 = vector.shape_cast %40 : vector<1x8x128xf32> to vector<8x128xf32>
    %42 = arith.select %36, %41, %32 : vector<8x128xi1>, vector<8x128xf32>
    %cst_11 = arith.constant 4.000000e-01 : f32
    %43 = vector.broadcast %cst_11 : f32 to vector<8x128xf32>
    %44 = arith.select %36, %43, %34 : vector<8x128xi1>, vector<8x128xf32>
    %45 = math.log %9 : vector<8x128xf32>
    %46 = arith.subf %39, %45 : vector<8x128xf32>
    %47 = tpu.reciprocal %9 : vector<8x128xf32> -> vector<8x128xf32>
    %48 = arith.mulf %42, %47 : vector<8x128xf32>
    %49 = arith.mulf %46, %44 : vector<8x128xf32>
    %cst_12 = arith.constant 1.000000e+00 : f32
    %50 = vector.broadcast %cst_12 : f32 to vector<8x128xf32>
    %51 = arith.subf %50, %48 : vector<8x128xf32>
    %52 = arith.mulf %51, %51 : vector<8x128xf32>
    %53 = arith.mulf %52, %49 : vector<8x128xf32>
    %cst_13 = arith.constant 0.000000e+00 : f32
    %54 = vector.broadcast %cst_13 : f32 to vector<8x128xf32>
    %55 = arith.subf %54, %53 : vector<8x128xf32>
    %56 = tpu.iota {dimensions = array<i32: 0>} : vector<8x128xi32>
    %57 = tpu.iota {dimensions = array<i32: 1>} : vector<8x128xi32>
    %c8_i32 = arith.constant 8 : i32
    %58 = arith.muli %arg1, %c8_i32 : i32
    %59 = vector.broadcast %58 : i32 to vector<8x128xi32>
    %60 = arith.addi %59, %56 : vector<8x128xi32>
    %c128_i32 = arith.constant 128 : i32
    %61 = vector.broadcast %c128_i32 : i32 to vector<8x128xi32>
    %62 = arith.muli %60, %61 : vector<8x128xi32>
    %63 = arith.addi %62, %57 : vector<8x128xi32>
    %c256_i32 = arith.constant 256 : i32
    %64 = vector.broadcast %c256_i32 : i32 to vector<8x128xi32>
    %65 = arith.cmpi slt, %63, %64 : vector<8x128xi32>
    %cst_14 = arith.constant 0.000000e+00 : f32
    %66 = vector.broadcast %cst_14 : f32 to vector<8x128xf32>
    %67 = arith.select %65, %55, %66 : vector<8x128xi1>, vector<8x128xf32>
    %cst_15 = arith.constant dense<0.000000e+00> : vector<128xf32>
    %68 = vector.multi_reduction <add>, %67, %cst_15 [0] : vector<8x128xf32> to vector<128xf32>
    %69 = vector.shape_cast %68 : vector<128xf32> to vector<1x128xf32>
    %70 = vector.shape_cast %69 : vector<1x128xf32> to vector<1x1x1x128xf32>
    %c0_16 = arith.constant 0 : index
    %c0_17 = arith.constant 0 : index
    %c0_18 = arith.constant 0 : index
    %c0_19 = arith.constant 0 : index
    %71 = vector.load %arg4[%c0_16, %c0_17, %c0_18, %c0_19] : memref<1x1x1x128xf32, #tpu.memory_space<vmem>>, vector<1x1x1x128xf32>
    tpu.vector_store %arg4[%c0_16, %c0_17, %c0_18, %c0_19], %70 {strides = array<i32>} : memref<1x1x1x128xf32, #tpu.memory_space<vmem>>, vector<1x1x1x128xf32>,
    return
  }
  func.func @transform_0(%arg0: i32, %arg1: i32) -> (i32, i32, i32, i32) {
    %c0_i32 = arith.constant 0 : i32
    %c0_i32_0 = arith.constant 0 : i32
    %c0_i32_1 = arith.constant 0 : i32
    return %arg0, %c0_i32, %arg1, %c0_i32_0 : i32, i32, i32, i32
  }
  func.func @transform_1(%arg0: i32, %arg1: i32) -> (i32, i32, i32, i32) {
    %c0_i32 = arith.constant 0 : i32
    %c0_i32_0 = arith.constant 0 : i32
    %c0_i32_1 = arith.constant 0 : i32
    return %arg0, %c0_i32, %arg1, %c0_i32_0 : i32, i32, i32, i32
  }
  func.func @transform_2(%arg0: i32, %arg1: i32) -> (i32, i32, i32, i32) {
    %c0_i32 = arith.constant 0 : i32
    %c0_i32_0 = arith.constant 0 : i32
    %c0_i32_1 = arith.constant 0 : i32
    return %arg0, %arg1, %c0_i32, %c0_i32_0 : i32, i32, i32, i32
  }
}

</mosaic_0001>

<llo_original>
// kernel: tpu_custom_call.1
$region0: #{tpu_custom_call.1}
  #allocation0 [shape = 'u32[]', space=smem, size = 0x4, offset = 0x4, fixed_abs, tag = 'smem constant byte address 0x4 - core index']
  #allocation1 [shape = 'u32[144,128]{1,0:T(1,128)}', space=vmem, size = 0x12000, scoped, tag = 'internal scratch']
  %s0 = inlined_call_operand.hbm [shape: f32[2,4,8,128], index: 0, kind: input, shape index: {}]
  %s1 = inlined_call_operand.hbm [shape: s32[2,1,8,128], index: 1, kind: input, shape index: {}]
  %s2 = inlined_call_operand.hbm [shape: f32[2,1,1,128], index: 2, kind: output, shape index: {}]
  %s3 = sld [smem:[#allocation0]]
  $region49: #{tpu_custom_call.1} parent=0
    _
  %s5 = ssub.s32 1, %s3
  %s6 = scalar_select 0, %s5, %s3
  $region1: #{tpu_custom_call.1} parent=0
    #allocation2 [shape = 'u8[32768]{0}', space=vmem, size = 0x8000, scoped, tag = 'input window, operand 0']
    #allocation3 [shape = 's32[2]{0}', space=sflag, size = 0x8, scoped, tag = 'scoped memory for tpu_custom_call.1']
    #allocation4 [shape = 's32[2]{0}', space=sflag, size = 0x8, scoped, tag = 'scoped memory for tpu_custom_call.1']
    #allocation5 [shape = 'u8[8192]{0}', space=vmem, size = 0x2000, scoped, tag = 'input window, operand 1']
    #allocation6 [shape = 's32[2]{0}', space=sflag, size = 0x8, scoped, tag = 'scoped memory for tpu_custom_call.1']
    #allocation7 [shape = 'u8[1024]{0}', space=vmem, size = 0x400, scoped, tag = 'output window, operand 0']
    %7 = vsyncpa [#allocation3], 0
    %s8 = scalar_lea.sflag [#allocation3], 1
    %9 = vsyncpa %s8, 0
    %10 = vsyncpa [#allocation6], 0
    %s11 = scalar_lea.sflag [#allocation6], 1
    %12 = vsyncpa %s11, 0
    %13 = vsyncpa [#allocation4], 0
    %s14 = scalar_lea.sflag [#allocation4], 1
    %15 = vsyncpa %s14, 0
    loop: start=0, step=1, limit=4
    $region2: #{tpu_custom_call.1} parent=1 // loop_pre_header
      _
    $region3: #{tpu_custom_call.1} parent=1 // loop_header
      %s17 = sphi 0, %s21
      %p18 = scmp.ge.s32.totalorder %s17, 4
      %s24 = sphi 0, %s36
      %s25 = sphi 0, %s32
      %s26 = sphi 0, %s24
      %s27 = sphi 0, %s25
      %s28 = sphi 0, %s26
      %s29 = sphi 0, %s27
      %s41 = sphi 0, %s43
      %s44 = sphi 0, %s41
      %s45 = sphi 0, %s44
      %s61 = sphi 0, %s45
      %s69 = sphi 0, %s71
      %s72 = sphi 0, %s69
      %s73 = sphi 0, %s72
      %s89 = sphi 0, %s73
      %s97 = sphi 0, %s99
      %s100 = sphi 0, %s97
      %s101 = sphi 0, %s100
      %s117 = sphi 0, %s101
    $region4: #{tpu_custom_call.1} parent=1 // loop_header_branch
      %20 = sbr.rel (%p18) target = $region8
    $region5: #{tpu_custom_call.1} parent=1 // loop_body
      %s22 = ssub.s32 %s17, 1
      %s23 = ssub.s32 %s17, 2
      %s30 = sadd.s32 1, %s25
      %p31 = scmp.ge.s32.totalorder %s30, 1
      %s32 = scalar_select %p31, 0, %s30
      %s33 = sadd.s32 1, %s24
      %s34 = scalar_select %p31, %s33, %s24
      %p35 = scmp.ge.s32.totalorder %s34, 2
      %s36 = scalar_select %p35, 0, %s34
      %s37 = ssub.s32 %s24, %s36
      %s38 = ssub.s32 %s25, %s32
      %s39 = sor.u32 %s37, %s38
      %p40 = scmp.eq.s32.totalorder %s39, 0
      %s42 = sadd.s32 %s41, 1
      %s43 = scalar_select %p40, %s41, %s42
      %p46 = pneg %p40
      %p47 = scmp.eq.s32.totalorder %s17, 1
      %p48 = por %p46, %p47
      %p49 = scmp.ne.s32.totalorder %s41, %s44
      %p50 = scmp.eq.s32.totalorder %s17, 0
      %p51 = por %p49, %p50
      %p52 = scmp.ne.s32.totalorder %s41, %s44
      %p53 = scmp.eq.s32.totalorder %s22, 1
      %p54 = por %p52, %p53
      %p55 = scmp.ne.s32.totalorder %s44, %s45
      %p56 = scmp.eq.s32.totalorder %s22, 0
      %p57 = por %p55, %p56
      %p58 = scmp.ne.s32.totalorder %s44, %s45
      %p59 = scmp.eq.s32.totalorder %s23, 1
      %p60 = por %p58, %p59
      %p62 = scmp.ne.s32.totalorder %s45, %s61
      %p63 = scmp.eq.s32.totalorder %s23, 0
      %p64 = por %p62, %p63
      %s65 = ssub.s32 %s24, %s36
      %s66 = ssub.s32 %s25, %s32
      %s67 = sor.u32 %s65, %s66
      %p68 = scmp.eq.s32.totalorder %s67, 0
      %s70 = sadd.s32 %s69, 1
      %s71 = scalar_select %p68, %s69, %s70
      %p74 = pneg %p68
      %p75 = scmp.eq.s32.totalorder %s17, 1
      %p76 = por %p74, %p75
      %p77 = scmp.ne.s32.totalorder %s69, %s72
      %p78 = scmp.eq.s32.totalorder %s17, 0
      %p79 = por %p77, %p78
      %p80 = scmp.ne.s32.totalorder %s69, %s72
      %p81 = scmp.eq.s32.totalorder %s22, 1
      %p82 = por %p80, %p81
      %p83 = scmp.ne.s32.totalorder %s72, %s73
      %p84 = scmp.eq.s32.totalorder %s22, 0
      %p85 = por %p83, %p84
      %p86 = scmp.ne.s32.totalorder %s72, %s73
      %p87 = scmp.eq.s32.totalorder %s23, 1
      %p88 = por %p86, %p87
      %p90 = scmp.ne.s32.totalorder %s73, %s89
      %p91 = scmp.eq.s32.totalorder %s23, 0
      %p92 = por %p90, %p91
      %s93 = ssub.s32 %s24, %s36
      %s94 = ssub.s32 %s25, %s32
      %s95 = sor.u32 %s93, %s94
      %p96 = scmp.eq.s32.totalorder %s95, 0
      %s98 = sadd.s32 %s97, 1
      %s99 = scalar_select %p96, %s97, %s98
      %p102 = pneg %p96
      %p103 = scmp.eq.s32.totalorder %s17, 1
      %p104 = por %p102, %p103
      %p105 = scmp.ne.s32.totalorder %s97, %s100
      %p106 = scmp.eq.s32.totalorder %s17, 0
      %p107 = por %p105, %p106
      %p108 = scmp.ne.s32.totalorder %s97, %s100
      %p109 = scmp.eq.s32.totalorder %s22, 1
      %p110 = por %p108, %p109
      %p111 = scmp.ne.s32.totalorder %s100, %s101
      %p112 = scmp.eq.s32.totalorder %s22, 0
      %p113 = por %p111, %p112
      %p114 = scmp.ne.s32.totalorder %s100, %s101
      %p115 = scmp.eq.s32.totalorder %s23, 1
      %p116 = por %p114, %p115
      %p118 = scmp.ne.s32.totalorder %s101, %s117
      %p119 = scmp.eq.s32.totalorder %s23, 0
      %p120 = por %p118, %p119
      %p121 = scmp.le.s32.totalorder 1, %s17
      %p122 = scmp.lt.s32.totalorder %s17, 3
      %p123 = pnand %p121, %p122
      %p124 = pneg %p123
      // Predicated region
      $region9: #{tpu_custom_call.1} parent=5 // pred_check
        _
      $region10: #{tpu_custom_call.1} parent=5 // pred_check_branch
        %126 = sbr.rel (%p123) target = $region12
      $region11: #{tpu_custom_call.1} parent=5 // pred_region
        %s127 = ssub.s32 %s17, 1
      $region12: #{tpu_custom_call.1} parent=5 // pred_fallthru
        _
      %p128 = scmp.lt.s32.totalorder %s17, 2
      // Predicated region
      $region13: #{tpu_custom_call.1} parent=5 // pred_check
        %p129 = pneg %p128
      $region14: #{tpu_custom_call.1} parent=5 // pred_check_branch
        %131 = sbr.rel (%p129) target = $region16
      $region15: #{tpu_custom_call.1} parent=5 // pred_region
        // Predicated region
        $region17: #{tpu_custom_call.1} parent=15 // pred_check
          %p132 = pneg %p51
        $region18: #{tpu_custom_call.1} parent=15 // pred_check_branch
          %134 = sbr.rel (%p132) target = $region20
        $region19: #{tpu_custom_call.1} parent=15 // pred_region
          %s135 = sand.u32 %s41, 1
          %s136 = scalar_lea.sflag [#allocation3], %s135
          %s137 = sand.u32 %s41, 1
          %s138 = smul.addr %s137, 32
          %s139 = scalar_lea.vmem [#allocation2], %s138
          %s141 = ssub.s32 512, 512
          %142 = vsyncadd %s136, %s141
          %s143 = smul.addr %s24, 4
          %s144 = sadd.s32 %s25, %s143
          %s145 = smul.addr %s144, 128
          %s146 = scalar_lea.hbm %s0, %s145
          %s147 = sshll.u32 %s139, 4
          %s148 = int_to_ptr.vmem [resolvable:$true] %s147
          %153 = dma.hbm_to_vmem [thread:$0]  %s146, 512, %s148, %s136, 128, 128, 8
        $region20: #{tpu_custom_call.1} parent=15 // pred_fallthru
          _
        // Predicated region
        $region21: #{tpu_custom_call.1} parent=15 // pred_check
          %p154 = pneg %p79
        $region22: #{tpu_custom_call.1} parent=15 // pred_check_branch
          %156 = sbr.rel (%p154) target = $region24
        $region23: #{tpu_custom_call.1} parent=15 // pred_region
          %s157 = sand.u32 %s69, 1
          %s158 = scalar_lea.sflag [#allocation6], %s157
          %s159 = sand.u32 %s69, 1
          %s160 = smul.addr %s159, 8
          %s161 = scalar_lea.vmem [#allocation5], %s160
          %s163 = ssub.s32 128, 128
          %164 = vsyncadd %s158, %s163
          %s165 = sadd.s32 %s25, %s24
          %s166 = smul.addr %s165, 128
          %s167 = scalar_lea.hbm %s1, %s166
          %s169 = sshll.u32 %s161, 4
          %s170 = int_to_ptr.vmem [resolvable:$true] %s169
          %172 = dma.hbm_to_vmem [thread:$0]  %s167, 128, %s170, %s158
        $region24: #{tpu_custom_call.1} parent=15 // pred_fallthru
          _
      $region16: #{tpu_custom_call.1} parent=5 // pred_fallthru
        _
      %p173 = scmp.le.s32.totalorder 1, %s17
      %p174 = scmp.lt.s32.totalorder %s17, 3
      %p175 = pnand %p173, %p174
      %p176 = pneg %p175
      // Predicated region
      $region25: #{tpu_custom_call.1} parent=5 // pred_check
        _
      $region26: #{tpu_custom_call.1} parent=5 // pred_check_branch
        %178 = sbr.rel (%p175) target = $region28
      $region27: #{tpu_custom_call.1} parent=5 // pred_region
        %s179 = ssub.s32 %s17, 1
        %s180 = sand.u32 %s44, 1
        %s181 = scalar_lea.sflag [#allocation3], %s180
        %s182 = sand.u32 %s44, 1
        %s183 = smul.addr %s182, 32
        %s184 = scalar_lea.vmem [#allocation2], %s183
        // Predicated region
        $region29: #{tpu_custom_call.1} parent=27 // pred_check
          %p185 = pneg %p57
        $region30: #{tpu_custom_call.1} parent=27 // pred_check_branch
          %187 = sbr.rel (%p185) target = $region32
        $region31: #{tpu_custom_call.1} parent=27 // pred_region
          %188 = dma.done %s181, 512
        $region32: #{tpu_custom_call.1} parent=27 // pred_fallthru
          _
        %s189 = sand.u32 %s72, 1
        %s190 = scalar_lea.sflag [#allocation6], %s189
        %s191 = sand.u32 %s72, 1
        %s192 = smul.addr %s191, 8
        %s193 = scalar_lea.vmem [#allocation5], %s192
        // Predicated region
        $region33: #{tpu_custom_call.1} parent=27 // pred_check
          %p194 = pneg %p85
        $region34: #{tpu_custom_call.1} parent=27 // pred_check_branch
          %196 = sbr.rel (%p194) target = $region36
        $region35: #{tpu_custom_call.1} parent=27 // pred_region
          %197 = dma.done %s190, 128
        $region36: #{tpu_custom_call.1} parent=27 // pred_fallthru
          _
        %s198 = sand.u32 %s44, 1
        %s199 = scalar_lea.sflag [#allocation3], %s198
        %s200 = sand.u32 %s44, 1
        %s201 = smul.addr %s200, 32
        %s202 = scalar_lea.vmem [#allocation2], %s201
        %p203 = pneg %p57
        %p204 = pneg %p54
        %s205 = sand.u32 %s72, 1
        %s206 = scalar_lea.sflag [#allocation6], %s205
        %s207 = sand.u32 %s72, 1
        %s208 = smul.addr %s207, 8
        %s209 = scalar_lea.vmem [#allocation5], %s208
        %p210 = pneg %p85
        %p211 = pneg %p82
        %p212 = pneg %p113
        %p213 = pneg %p110
        %s214 = sand.u32 %s100, 1
        %s215 = scalar_lea.sflag [#allocation4], %s214
        %s216 = sand.u32 %s100, 1
        %s217 = scalar_lea.vmem [#allocation7], %s216
        %v218 = vld [vmem:[%s184] sm:$0xff]
        %v219 = vld [vmem:[%s184 + $0x8] sm:$0xff]
        %v220 = vld [vmem:[%s184 + $0x10] sm:$0xff]
        %v221 = vld [vmem:[%s184 + $0x18] sm:$0xff]
        %v222 = vld [vmem:[%s193] sm:$0xff]
        %v223 = vmax.f32 %v218, %v219
        %v224 = vmax.f32 %v220, %v221
        %v225 = vmax.f32 %v223, %v224
        %v226 = vsub.f32 %v218, %v225
        %v227 = vsub.f32 %v219, %v225
        %v228 = vsub.f32 %v220, %v225
        %v229 = vsub.f32 %v221, %v225
        %v230 = vmul.f32 %v226, 1.442695
        %v231 = vpow.pop %v230
        %v232 = vmul.f32 %v227, 1.442695
        %v233 = vpow.pop %v232
        %v234 = vmul.f32 %v228, 1.442695
        %v235 = vpow.pop %v234
        %v236 = vmul.f32 %v229, 1.442695
        %v237 = vpow.pop %v236
        %v238 = vadd.f32 %v231, %v233
        %v239 = vadd.f32 %v238, %v235
        %v240 = vadd.f32 %v239, %v237
        %vm241 = vcmp.eq.s32.totalorder %v222, 1
        %v242 = vsel %vm241, %v227, %v226
        %v243 = vsel %vm241, %v233, %v231
        %v244 = vsel %vm241, 0.2, 0.1
        %vm245 = vcmp.eq.s32.totalorder %v222, 2
        %v246 = vsel %vm245, %v228, %v242
        %v247 = vsel %vm245, %v235, %v243
        %v248 = vsel %vm245, 0.3, %v244
        %vm249 = vcmp.eq.s32.totalorder %v222, 3
        %v250 = vsel %vm249, %v229, %v246
        %v251 = vsel %vm249, %v237, %v247
        %v252 = vsel %vm249, 0.4, %v248
        %v253 = vlog2.pop %v240
        %v254 = vmul.f32 %v253, 0.6931472
        %v255 = vsub.f32 %v250, %v254
        %v256 = vrcp.pop %v240
        %v257 = vmul.f32 %v251, %v256
        %v258 = vmul.f32 %v255, %v252
        %v259 = vsub.f32 1.0, %v257
        %v260 = vmul.f32 %v259, %v259
        %v261 = vmul.f32 %v260, %v258
        %v262 = vsub.f32 0.0, %v261
        %v263 = vlaneseq
        %v264 = vshrl.u32 %v263, 7
        %v265 = vlaneseq
        %v266 = vand.u32 %v265, 127
        %s267 = smul.u32 %s27, 8
        %v268 = vstv %s267
        %v269 = vadd.s32 %v268, %v264
        %v270 = vmul.u32 %v269, 128
        %v271 = vadd.s32 %v270, %v266
        %vm272 = vcmp.lt.s32.totalorder %v271, 256
        %v273 = vsel %vm272, %v262, 0.0
        %v274 = vrot.slane %v273, 4
        %v275 = vadd.f32 %v273, %v274
        %v276 = vrot.slane %v275, 2
        %v277 = vadd.f32 %v275, %v276
        %v278 = vrot.slane %v277, 1
        %v279 = vadd.f32 %v277, %v278
        %280 = vst [vmem:[%s217] sm:$0x1] %v279
        %s281 = sand.u32 %s100, 1
        %s282 = scalar_lea.sflag [#allocation4], %s281
        %s283 = sand.u32 %s100, 1
        %s284 = scalar_lea.vmem [#allocation7], %s283
        // Predicated region
        $region37: #{tpu_custom_call.1} parent=27 // pred_check
          %p285 = pneg %p110
        $region38: #{tpu_custom_call.1} parent=27 // pred_check_branch
          %287 = sbr.rel (%p285) target = $region40
        $region39: #{tpu_custom_call.1} parent=27 // pred_region
          %s289 = ssub.s32 16, 16
          %290 = vsyncadd %s282, %s289
          %s291 = sadd.s32 %s27, %s26
          %s292 = smul.addr %s291, 16
          %s293 = scalar_lea.hbm %s2, %s292
          %s295 = sshll.u32 %s284, 4
          %s296 = int_to_ptr.vmem [resolvable:$true] %s295
          %298 = dma.vmem_to_hbm [thread:$0]  %s296, 16, %s293, %s282
        $region40: #{tpu_custom_call.1} parent=27 // pred_fallthru
          _
      $region28: #{tpu_custom_call.1} parent=5 // pred_fallthru
        _
      %p299 = scmp.le.s32.totalorder 2, %s17
      // Predicated region
      $region41: #{tpu_custom_call.1} parent=5 // pred_check
        %p300 = pneg %p299
      $region42: #{tpu_custom_call.1} parent=5 // pred_check_branch
        %302 = sbr.rel (%p300) target = $region44
      $region43: #{tpu_custom_call.1} parent=5 // pred_region
        %s303 = ssub.s32 %s17, 2
        // Predicated region
        $region45: #{tpu_custom_call.1} parent=43 // pred_check
          %p304 = pneg %p116
        $region46: #{tpu_custom_call.1} parent=43 // pred_check_branch
          %306 = sbr.rel (%p304) target = $region48
        $region47: #{tpu_custom_call.1} parent=43 // pred_region
          %s307 = sand.u32 %s101, 1
          %s308 = scalar_lea.sflag [#allocation4], %s307
          %s309 = sand.u32 %s101, 1
          %s310 = scalar_lea.vmem [#allocation7], %s309
          %311 = dma.done %s308, 16
        $region48: #{tpu_custom_call.1} parent=43 // pred_fallthru
          _
      $region44: #{tpu_custom_call.1} parent=5 // pred_fallthru
        _
    $region6: #{tpu_custom_call.1} parent=1 // loop_footer
      %s21 = sadd.s32 1, %s17
    $region7: #{tpu_custom_call.1} parent=1 // loop_footer_branch
      %16 = sbr.rel target = $region3
    $region8: #{tpu_custom_call.1} parent=1 // loop_exit
      _
    %312 = vsyncpa [#allocation3], 1
    %s313 = scalar_lea.sflag [#allocation3], 1
    %314 = vsyncpa %s313, 1
    %315 = vsyncpa [#allocation6], 1
    %s316 = scalar_lea.sflag [#allocation6], 1
    %317 = vsyncpa %s316, 1
    %318 = vsyncpa [#allocation4], 1
    %s319 = scalar_lea.sflag [#allocation4], 1
    %320 = vsyncpa %s319, 1

</llo_original>
